<compile_context>
chip_gen: v5e
topology: v5e:2x2
jax: 0.10.0
libtpu: 0.0.40
codegen_flags: <defaults>
</compile_context>

<pallas_src>
import math
from functools import partial

import jax
import jax.numpy as jnp
from jax.experimental import pallas as pl
from jax.experimental.pallas import tpu as pltpu

SQRT2 = math.sqrt(2.0)
LN_EPS = 1e-5
MAX_ROW_TILE = 256          # 256-wide MXU on v6e/v7x; still fine on v5e.


def _vmem_capacity_bytes():
    try:
        return int(pltpu.get_tpu_info().vmem_capacity_bytes)
    except Exception:
        return 64 * 1024 * 1024     # conservative (v7x-sized) fallback


_VMEM_CAP = _vmem_capacity_bytes()
# Leave headroom for compiler-internal scratch: ~54 MiB on v7x, ~108 MiB on v5e/v6e.
VMEM_LIMIT = int(min(int(_VMEM_CAP * 0.85), _VMEM_CAP - (8 << 20)))


def _gelu(x):
    # exact (erf-based) GELU, matching torch.nn.GELU default
    return 0.5 * x * (1.0 + jax.lax.erf(x / SQRT2))


def _layernorm(x, gamma, beta):
    mean = jnp.mean(x, axis=-1, keepdims=True)
    var = jnp.mean(jnp.square(x - mean), axis=-1, keepdims=True)
    return (x - mean) * jax.lax.rsqrt(var + LN_EPS) * gamma + beta


def _round_up(n, m):
    return ((n + m - 1) // m) * m


def _row_tiling(B):
    tb = min(MAX_ROW_TILE, _round_up(B, 8))
    return tb, _round_up(B, tb)


def _pad_rows(x, Bp):
    B = x.shape[0]
    if Bp == B:
        return x
    return jnp.pad(x, ((0, Bp - B), (0, 0)))


# ----------------------------- kernel bodies -----------------------------

def mlp_stack_kernel(x_ref, w_ref, p_ref, o_ref, *, resident):
    # Fused residual stack.  Grid = (row_tiles, n_blocks); the (tb, h) f32
    # activation lives in the output buffer across the block axis and is
    # written to HBM once per row tile.
    #  resident=True : w_ref is the full (n_blocks, h, h) stack, DMA'd once.
    #  resident=False: w_ref is the streamed (1, h, h) per-layer weight.
    k = pl.program_id(1)

    @pl.when(k == 0)
    def _():
        o_ref[...] = x_ref[...]

    idx = k if resident else 0
    w = w_ref[idx]                       # (h, h) bf16 weight of block k
    p = p_ref[idx]                       # (3, h) f32: [bias, gamma, beta]
    x = o_ref[...]                       # resident f32 activation
    y = jnp.dot(x.astype(jnp.bfloat16), w, preferred_element_type=jnp.float32)
    y = y + p[0:1, :]
    y = _layernorm(y, p[1:2, :], p[2:3, :])
    o_ref[...] = _gelu(y) + x            # Dropout(drop2) = identity (eval)


def heads_projector_kernel(x_ref, hw_ref, hb_ref,
                           g1_ref, c1_ref, w1_ref, b1_ref,
                           g2_ref, c2_ref, w2_ref, b2_ref,
                           g3_ref, c3_ref, w3_ref, b3_ref, o_ref):
    # One branch (image or text): head Linear -> (LN -> GELU -> Linear) x 3.
    # The head output and all intermediates never leave VMEM.
    latent = w1_ref.shape[1]
    x = x_ref[...].astype(jnp.bfloat16)
    z = jnp.dot(x, hw_ref[0], preferred_element_type=jnp.float32) + hb_ref[0]
    # TODO(synk): for T > 1 this in-kernel reshape crosses (8,128) tiles; it
    # should be wrapper-side layout plumbing (no-op for out_dim == latent).
    if z.shape[-1] != latent:
        z = z.reshape(-1, latent)
    z = _gelu(_layernorm(z, g1_ref[0], c1_ref[0]))
    z = jnp.dot(z.astype(jnp.bfloat16), w1_ref[0],
                preferred_element_type=jnp.float32) + b1_ref[0]
    z = _gelu(_layernorm(z, g2_ref[0], c2_ref[0]))
    z = jnp.dot(z.astype(jnp.bfloat16), w2_ref[0],
                preferred_element_type=jnp.float32) + b2_ref[0]
    z = _gelu(_layernorm(z, g3_ref[0], c3_ref[0]))
    z = jnp.dot(z.astype(jnp.bfloat16), w3_ref[0],
                preferred_element_type=jnp.float32) + b3_ref[0]
    o_ref[0] = z.reshape(o_ref.shape[1:])


# ----------------------------- pallas wrappers -----------------------------

def mlp_stack(x, w_all, p_all):
    B, h = x.shape
    n_blocks = w_all.shape[0]
    tb, Bp = _row_tiling(B)
    xp = _pad_rows(x, Bp)
    grid = (Bp // tb, n_blocks)

    w_bytes = int(w_all.size) * w_all.dtype.itemsize
    p_bytes = int(p_all.size) * 4
    act_bytes = 4 * tb * h * 4           # x + o blocks, double-buffered, f32
    # Hold the full weight stack resident in VMEM (single-buffered) when it fits.
    resident = (w_bytes + p_bytes + act_bytes + (2 << 20)) <= int(VMEM_LIMIT * 0.9)

    if resident:
        w_spec = pl.BlockSpec((n_blocks, h, h), lambda i, k: (0, 0, 0),
                              pipeline_mode=pl.Buffered(1))
        p_spec = pl.BlockSpec((n_blocks, 3, h), lambda i, k: (0, 0, 0),
                              pipeline_mode=pl.Buffered(1))
        w_traffic = w_bytes
    else:
        # Per-layer streaming; deeper prefetch hides the per-layer DMA bubble.
        nbuf = 3 if 3 * h * h * w_all.dtype.itemsize <= VMEM_LIMIT // 2 else 2
        w_spec = pl.BlockSpec((1, h, h), lambda i, k: (k, 0, 0),
                              pipeline_mode=pl.Buffered(nbuf))
        p_spec = pl.BlockSpec((1, 3, h), lambda i, k: (k, 0, 0))
        w_traffic = grid[0] * w_bytes

    cost = pl.CostEstimate(
        flops=2 * Bp * h * h * n_blocks,
        transcendentals=Bp * h * n_blocks,
        bytes_accessed=w_traffic + p_bytes + 2 * Bp * h * 4,
    )
    out = pl.pallas_call(
        partial(mlp_stack_kernel, resident=resident),
        out_shape=jax.ShapeDtypeStruct((Bp, h), jnp.float32),
        grid=grid,
        in_specs=[
            pl.BlockSpec((tb, h), lambda i, k: (i, 0)),   # x (consumed at k==0)
            w_spec,                                       # bf16 weights
            p_spec,                                       # packed bias/gamma/beta
        ],
        out_specs=pl.BlockSpec((tb, h), lambda i, k: (i, 0)),
        compiler_params=pltpu.CompilerParams(
            dimension_semantics=("parallel", "arbitrary"),
            vmem_limit_bytes=VMEM_LIMIT),
        cost_estimate=cost,
    )(xp, w_all, p_all)
    return out[:B]


def heads_projectors(x, p):
    """Fused heads + projectors. Grid = (branch, row_tiles); branch 0 = image,
    branch 1 = text. Branch axis is 'parallel' (second TensorCore on v7x)."""
    B, h = x.shape
    hw = p["head_w"]                       # (2, h, out_dim) bf16
    nb, _, out_dim = hw.shape
    latent = p["w1"].shape[1]
    ph = p["w1"].shape[2]
    T = out_dim // latent
    tb, Bp = _row_tiling(B)
    xp = _pad_rows(x, Bp)
    grid = (nb, Bp // tb)

    def bspec(*shape):
        # Branch-indexed weight/param block: fetched once per branch, single
        # buffer (no pointless double-buffering of multi-MiB weights).
        return pl.BlockSpec((1,) + shape, lambda b, i: (b, 0, 0),
                            pipeline_mode=pl.Buffered(1))

    cost = pl.CostEstimate(
        flops=2 * nb * Bp * (h * out_dim
                             + T * (latent * ph + ph * ph + ph * latent)),
        transcendentals=nb * Bp * T * (latent + 2 * ph),
        bytes_accessed=sum(int(p[k].size) * p[k].dtype.itemsize
                           for k in ("head_w", "w1", "w2", "w3"))
        + nb * Bp * h * 4 + nb * Bp * out_dim * 4,
    )

    out = pl.pallas_call(
        heads_projector_kernel,
        out_shape=jax.ShapeDtypeStruct((nb, Bp, out_dim), jnp.float32),
        grid=grid,
        in_specs=[
            pl.BlockSpec((tb, h), lambda b, i: (i, 0)),   # shared activation
            bspec(h, out_dim), bspec(1, out_dim),         # head W, b
            bspec(1, latent), bspec(1, latent),           # ln1 gamma/beta
            bspec(latent, ph), bspec(1, ph),              # w1, b1
            bspec(1, ph), bspec(1, ph),                   # ln2 gamma/beta
            bspec(ph, ph), bspec(1, ph),                  # w2, b2
            bspec(1, ph), bspec(1, ph),                   # ln3 gamma/beta
            bspec(ph, latent), bspec(1, latent),          # w3, b3
        ],
        out_specs=pl.BlockSpec((1, tb, out_dim), lambda b, i: (b, i, 0)),
        compiler_params=pltpu.CompilerParams(
            dimension_semantics=("parallel", "parallel"),
            vmem_limit_bytes=VMEM_LIMIT),
        cost_estimate=cost,
    )(xp, p["head_w"], p["head_b"],
      p["ln1_g"], p["ln1_b"], p["w1"], p["b1"],
      p["ln2_g"], p["ln2_b"], p["w2"], p["b2"],
      p["ln3_g"], p["ln3_b"], p["w3"], p["b3"])
    return out[:, :B]


# ----------------------------- model -----------------------------

def init_params(key, *, h, out_dim_image, out_dim_text, latent_size,
                proj_hidden, n_blocks):
    assert out_dim_image == out_dim_text, \
        "fused branch kernel expects equal head output dims (default: 768/768)"
    keys = iter(jax.random.split(key, 256))

    def lin(din, dout):
        bound = 1.0 / math.sqrt(din)
        w = jax.random.uniform(next(keys), (din, dout), jnp.float32, -bound, bound)
        b = jax.random.uniform(next(keys), (1, dout), jnp.float32, -bound, bound)
        return w.astype(jnp.bfloat16), b        # bf16 weights, f32 biases

    def ln(d):
        return jnp.ones((1, d), jnp.float32), jnp.zeros((1, d), jnp.float32)

    mlp_w, mlp_p = [], []
    for _ in range(n_blocks):
        w, b = lin(h, h)
        g, bt = ln(h)
        mlp_w.append(w)
        mlp_p.append(jnp.concatenate([b, g, bt], axis=0))   # (3, h)

    def branch(out_dim):
        d = {}
        d["head_w"], d["head_b"] = lin(h, out_dim)
        d["ln1_g"], d["ln1_b"] = ln(latent_size)
        d["w1"], d["b1"] = lin(latent_size, proj_hidden)
        d["ln2_g"], d["ln2_b"] = ln(proj_hidden)
        d["w2"], d["b2"] = lin(proj_hidden, proj_hidden)
        d["ln3_g"], d["ln3_b"] = ln(proj_hidden)
        d["w3"], d["b3"] = lin(proj_hidden, latent_size)
        return d

    branches = [branch(out_dim_image), branch(out_dim_text)]  # [image, text]
    stacked = {k: jnp.stack([br[k] for br in branches]) for k in branches[0]}

    params = {
        "mlp_w": jnp.stack(mlp_w),        # (n_blocks, h, h) bf16
        "mlp_p": jnp.stack(mlp_p),        # (n_blocks, 3, h) f32 [bias,gamma,beta]
        "latent_size": latent_size,
    }
    params.update(stacked)
    return params


def brain_network_forward(x, params):
    B = x.shape[0]
    latent = params["latent_size"]
    a = mlp_stack(x, params["mlp_w"], params["mlp_p"])
    a = a.reshape(B, -1)
    out = heads_projectors(a, params)              # (2, B, T*latent)
    return (out[0].reshape(B, -1, latent),
            out[1].reshape(B, -1, latent))


# ----------------------------- pure-JAX reference -----------------------------

def reference_forward(x, params):
    residual = x
    n_blocks = params["mlp_w"].shape[0]
    for k in range(n_blocks):
        w = params["mlp_w"][k].astype(jnp.float32)
        y = x @ w + params["mlp_p"][k, 0:1]
        y = _layernorm(y, params["mlp_p"][k, 1:2], params["mlp_p"][k, 2:3])
        x = _gelu(y) + residual
        residual = x

    B = x.shape[0]
    x = x.reshape(B, -1)
    latent = params["latent_size"]

    def branch(br):
        z = x @ params["head_w"][br].astype(jnp.float32) + params["head_b"][br]
        z = z.reshape(B, -1, latent)
        z = _gelu(_layernorm(z, params["ln1_g"][br], params["ln1_b"][br])) \
            @ params["w1"][br].astype(jnp.float32) + params["b1"][br]
        z = _gelu(_layernorm(z, params["ln2_g"][br], params["ln2_b"][br])) \
            @ params["w2"][br].astype(jnp.float32) + params["b2"][br]
        z = _gelu(_layernorm(z, params["ln3_g"][br], params["ln3_b"][br])) \
            @ params["w3"][br].astype(jnp.float32) + params["b3"][br]
        return z

    return branch(0), branch(1)


# ----------------------------- main -----------------------------

if __name__ == "__main__":
    # Small config consistent with the module's forward (stands in for
    # h=2048, out_dim=latent=768, projector hidden 2048, n_blocks=4).
    B = 8
    H = 256
    OUT_DIM = 128
    LATENT = 128
    PROJ_HIDDEN = 256
    N_BLOCKS = 2

    key = jax.random.PRNGKey(0)
    pkey, xkey = jax.random.split(key)
    params = init_params(
        pkey, h=H, out_dim_image=OUT_DIM, out_dim_text=OUT_DIM,
        latent_size=LATENT, proj_hidden=PROJ_HIDDEN, n_blocks=N_BLOCKS)

    x = jax.random.normal(xkey, (B, H), dtype=jnp.float32)

    out_img, out_txt = brain_network_forward(x, params)
    out_img = jax.block_until_ready(out_img)
    out_txt = jax.block_until_ready(out_txt)

    ref_img, ref_txt = reference_forward(x, params)
    assert out_img.shape == (B, 1, LATENT) and out_txt.shape == (B, 1, LATENT)
    # bf16 matmul operands (f32 accumulation) vs f32 reference -> relaxed tol.
    assert jnp.allclose(out_img, ref_img, atol=2e-2, rtol=2e-2)
    assert jnp.allclose(out_txt, ref_txt, atol=2e-2, rtol=2e-2)

    print("KERNEL_OK")
</pallas_src>

<mosaic_0001>
module attributes {stable_mosaic.version = 11 : i64} {
  func.func @mlp_stack_kernel(%arg0: i32, %arg1: i32, %arg2: memref<8x256xf32, #tpu.memory_space<vmem>>, %arg3: memref<2x256x256xbf16, #tpu.memory_space<vmem>>, %arg4: memref<2x3x256xf32, #tpu.memory_space<vmem>>, %arg5: memref<8x256xf32, #tpu.memory_space<vmem>>) attributes {dimension_semantics = [#tpu.dimension_semantics<parallel>, #tpu.dimension_semantics<arbitrary>], iteration_bounds = array<i64: 1, 2>, scalar_prefetch = 0 : i64, scratch_operands = 0 : i64, tpu.core_type = #tpu.core_type<tc>, window_params = [{transform_indices = @transform_0, window_bounds = array<i64: 8, 256>}, {pipeline_mode = #tpu.pipeline_mode<synchronous>, transform_indices = @transform_1, window_bounds = array<i64: 2, 256, 256>}, {pipeline_mode = #tpu.pipeline_mode<synchronous>, transform_indices = @transform_2, window_bounds = array<i64: 2, 3, 256>}, {transform_indices = @transform_3, window_bounds = array<i64: 8, 256>}]} {
    %c0_i32 = arith.constant 0 : i32
    %0 = arith.cmpi eq, %arg1, %c0_i32 : i32
    %1 = arith.extui %0 : i1 to i32
    %c0_i32_0 = arith.constant 0 : i32
    %2 = arith.cmpi ne, %1, %c0_i32_0 : i32
    scf.if %2 {
      %c0_16 = arith.constant 0 : index
      %c0_17 = arith.constant 0 : index
      %49 = vector.load %arg2[%c0_16, %c0_17] : memref<8x256xf32, #tpu.memory_space<vmem>>, vector<8x256xf32>
      %c0_18 = arith.constant 0 : index
      %c0_19 = arith.constant 0 : index
      %50 = vector.load %arg5[%c0_18, %c0_19] : memref<8x256xf32, #tpu.memory_space<vmem>>, vector<8x256xf32>
      tpu.vector_store %arg5[%c0_18, %c0_19], %49 {strides = array<i32>} : memref<8x256xf32, #tpu.memory_space<vmem>>, vector<8x256xf32>,
    } else {
    }
    %3 = arith.index_cast %arg1 : i32 to index
    %c0 = arith.constant 0 : index
    %c0_1 = arith.constant 0 : index
    %4 = vector.load %arg3[%3, %c0, %c0_1] : memref<2x256x256xbf16, #tpu.memory_space<vmem>>, vector<1x256x256xbf16>
    %5 = vector.shape_cast %4 : vector<1x256x256xbf16> to vector<256x256xbf16>
    %6 = arith.index_cast %arg1 : i32 to index
    %c0_2 = arith.constant 0 : index
    %c0_3 = arith.constant 0 : index
    %7 = vector.load %arg4[%6, %c0_2, %c0_3] : memref<2x3x256xf32, #tpu.memory_space<vmem>>, vector<1x3x256xf32>
    %8 = vector.shape_cast %7 : vector<1x3x256xf32> to vector<3x256xf32>
    %c0_4 = arith.constant 0 : index
    %c0_5 = arith.constant 0 : index
    %9 = vector.load %arg5[%c0_4, %c0_5] : memref<8x256xf32, #tpu.memory_space<vmem>>, vector<8x256xf32>
    %10 = arith.truncf %9 : vector<8x256xf32> to vector<8x256xbf16>
    %cst = arith.constant dense<0.000000e+00> : vector<8x256xf32>
    %11 = tpu.matmul %10, %5, %cst {dimension_numbers = #tpu.dot_dimension_numbers<[1], [0], [0], [1], [0, 0, 1, 1], [], []>} : vector<8x256xbf16>, vector<256x256xbf16>, vector<8x256xf32> -> vector<8x256xf32>
    %12 = vector.extract_strided_slice %8 {offsets = [0, 0], sizes = [1, 256], strides = [1, 1]} : vector<3x256xf32> to vector<1x256xf32>
    %13 = vector.broadcast %12 : vector<1x256xf32> to vector<8x256xf32>
    %14 = arith.addf %11, %13 : vector<8x256xf32>
    %15 = vector.extract_strided_slice %8 {offsets = [1, 0], sizes = [1, 256], strides = [1, 1]} : vector<3x256xf32> to vector<1x256xf32>
    %16 = vector.extract_strided_slice %8 {offsets = [2, 0], sizes = [1, 256], strides = [1, 1]} : vector<3x256xf32> to vector<1x256xf32>
    %cst_6 = arith.constant dense<0.000000e+00> : vector<8xf32>
    %17 = vector.multi_reduction <add>, %14, %cst_6 [1] : vector<8x256xf32> to vector<8xf32>
    %18 = vector.shape_cast %17 : vector<8xf32> to vector<8x1xf32>
    %cst_7 = arith.constant 2.560000e+02 : f32
    %19 = vector.broadcast %cst_7 : f32 to vector<8x1xf32>
    %20 = arith.divf %18, %19 : vector<8x1xf32>
    %21 = vector.broadcast %20 : vector<8x1xf32> to vector<8x256xf32>
    %22 = arith.subf %14, %21 : vector<8x256xf32>
    %23 = arith.mulf %22, %22 : vector<8x256xf32>
    %cst_8 = arith.constant dense<0.000000e+00> : vector<8xf32>
    %24 = vector.multi_reduction <add>, %23, %cst_8 [1] : vector<8x256xf32> to vector<8xf32>
    %25 = vector.shape_cast %24 : vector<8xf32> to vector<8x1xf32>
    %cst_9 = arith.constant 2.560000e+02 : f32
    %26 = vector.broadcast %cst_9 : f32 to vector<8x1xf32>
    %27 = arith.divf %25, %26 : vector<8x1xf32>
    %28 = vector.broadcast %20 : vector<8x1xf32> to vector<8x256xf32>
    %29 = arith.subf %14, %28 : vector<8x256xf32>
    %cst_10 = arith.constant 9.99999974E-6 : f32
    %30 = vector.broadcast %cst_10 : f32 to vector<8x1xf32>
    %31 = arith.addf %27, %30 : vector<8x1xf32>
    %32 = math.rsqrt %31 : vector<8x1xf32>
    %33 = vector.broadcast %32 : vector<8x1xf32> to vector<8x256xf32>
    %34 = arith.mulf %29, %33 : vector<8x256xf32>
    %35 = vector.broadcast %15 : vector<1x256xf32> to vector<8x256xf32>
    %36 = arith.mulf %34, %35 : vector<8x256xf32>
    %37 = vector.broadcast %16 : vector<1x256xf32> to vector<8x256xf32>
    %38 = arith.addf %36, %37 : vector<8x256xf32>
    %cst_11 = arith.constant 5.000000e-01 : f32
    %39 = vector.broadcast %cst_11 : f32 to vector<8x256xf32>
    %40 = arith.mulf %39, %38 : vector<8x256xf32>
    %cst_12 = arith.constant 1.41421354 : f32
    %41 = vector.broadcast %cst_12 : f32 to vector<8x256xf32>
    %42 = arith.divf %38, %41 : vector<8x256xf32>
    %43 = math.erf %42 : vector<8x256xf32>
    %cst_13 = arith.constant 1.000000e+00 : f32
    %44 = vector.broadcast %cst_13 : f32 to vector<8x256xf32>
    %45 = arith.addf %44, %43 : vector<8x256xf32>
    %46 = arith.mulf %40, %45 : vector<8x256xf32>
    %47 = arith.addf %46, %9 : vector<8x256xf32>
    %c0_14 = arith.constant 0 : index
    %c0_15 = arith.constant 0 : index
    %48 = vector.load %arg5[%c0_14, %c0_15] : memref<8x256xf32, #tpu.memory_space<vmem>>, vector<8x256xf32>
    tpu.vector_store %arg5[%c0_14, %c0_15], %47 {strides = array<i32>} : memref<8x256xf32, #tpu.memory_space<vmem>>, vector<8x256xf32>,
    return
  }
  func.func @transform_0(%arg0: i32, %arg1: i32) -> (i32, i32) {
    %c0_i32 = arith.constant 0 : i32
    %c0_i32_0 = arith.constant 0 : i32
    return %arg0, %c0_i32 : i32, i32
  }
  func.func @transform_1(%arg0: i32, %arg1: i32) -> (i32, i32, i32) {
    %c0_i32 = arith.constant 0 : i32
    %c0_i32_0 = arith.constant 0 : i32
    %c0_i32_1 = arith.constant 0 : i32
    %c0_i32_2 = arith.constant 0 : i32
    return %c0_i32, %c0_i32_0, %c0_i32_1 : i32, i32, i32
  }
  func.func @transform_2(%arg0: i32, %arg1: i32) -> (i32, i32, i32) {
    %c0_i32 = arith.constant 0 : i32
    %c0_i32_0 = arith.constant 0 : i32
    %c0_i32_1 = arith.constant 0 : i32
    %c0_i32_2 = arith.constant 0 : i32
    return %c0_i32, %c0_i32_0, %c0_i32_1 : i32, i32, i32
  }
  func.func @transform_3(%arg0: i32, %arg1: i32) -> (i32, i32) {
    %c0_i32 = arith.constant 0 : i32
    %c0_i32_0 = arith.constant 0 : i32
    return %arg0, %c0_i32 : i32, i32
  }
}

</mosaic_0001>

<llo_original>
// kernel: tpu_custom_call.1
$region0: #{tpu_custom_call.1}
  #allocation0 [shape = 'u32[]', space=smem, size = 0x4, offset = 0x4, fixed_abs, tag = 'smem constant byte address 0x4 - core index']
  #allocation1 [shape = 'u32[72,128]{1,0:T(1,128)}', space=vmem, size = 0x9000, scoped, tag = 'internal scratch']
  %s0 = inlined_call_operand.vmem [shape: f32[8,256], index: 0, kind: input, shape index: {}]
  %s1 = inlined_call_operand.hbm [shape: bf16[2,256,256], index: 1, kind: input, shape index: {}]
  %s2 = inlined_call_operand.vmem [shape: f32[2,3,256], index: 2, kind: input, shape index: {}]
  %s3 = inlined_call_operand.hbm [shape: f32[8,256], index: 3, kind: output, shape index: {}]
  %s4 = sld [smem:[#allocation0]]
  $region53: #{tpu_custom_call.1} parent=0
    _
  %s6 = ssub.s32 1, %s4
  %s7 = scalar_select 0, %s6, %s4
  $region1: #{tpu_custom_call.1} parent=0
    #allocation2 [shape = 'u8[262144]{0}', space=vmem, size = 0x40000, scoped, tag = 'input window, operand 1, single buffered']
    #allocation3 [shape = 's32[2]{0}', space=sflag, size = 0x8, scoped, tag = 'scoped memory for tpu_custom_call.1']
    #allocation4 [shape = 's32[2]{0}', space=sflag, size = 0x8, scoped, tag = 'scoped memory for tpu_custom_call.1']
    #allocation5 [shape = 'u8[8192]{0}', space=vmem, size = 0x2000, scoped, tag = 'output window, operand 0, single buffered']
    %8 = vsyncpa [#allocation3], 0
    %9 = vsyncpa [#allocation4], 0
    loop: start=0, step=1, limit=4
    $region2: #{tpu_custom_call.1} parent=1 // loop_pre_header
      _
    $region3: #{tpu_custom_call.1} parent=1 // loop_header
      %s11 = sphi 0, %s15
      %p12 = scmp.ge.s32.totalorder %s11, 4
      %s18 = sphi 0, %s30
      %s19 = sphi 0, %s26
      %s20 = sphi 0, %s18
      %s21 = sphi 0, %s19
      %s22 = sphi 0, %s20
      %s23 = sphi 0, %s21
      %s33 = sphi 0, %s35
      %s36 = sphi 0, %s33
      %s37 = sphi 0, %s36
      %s53 = sphi 0, %s37
      %s57 = sphi 0, %s57
      %s59 = sphi 0, %s57
      %s60 = sphi 0, %s59
      %s74 = sphi 0, %s60
      %s78 = sphi 0, %s78
      %s80 = sphi 0, %s78
      %s81 = sphi 0, %s80
      %s95 = sphi 0, %s81
      %s101 = sphi 0, %s103
      %s104 = sphi 0, %s101
      %s105 = sphi 0, %s104
      %s121 = sphi 0, %s105
    $region4: #{tpu_custom_call.1} parent=1 // loop_header_branch
      %14 = sbr.rel (%p12) target = $region8
    $region5: #{tpu_custom_call.1} parent=1 // loop_body
      %s16 = ssub.s32 %s11, 1
      %s17 = ssub.s32 %s11, 2
      %s24 = sadd.s32 1, %s19
      %p25 = scmp.ge.s32.totalorder %s24, 2
      %s26 = scalar_select %p25, 0, %s24
      %s27 = sadd.s32 1, %s18
      %s28 = scalar_select %p25, %s27, %s18
      %p29 = scmp.ge.s32.totalorder %s28, 1
      %s30 = scalar_select %p29, 0, %s28
      %s31 = ssub.s32 %s18, %s30
      %p32 = scmp.eq.s32.totalorder %s31, 0
      %s34 = sadd.s32 %s33, 1
      %s35 = scalar_select %p32, %s33, %s34
      %p38 = pneg %p32
      %p39 = scmp.eq.s32.totalorder %s11, 1
      %p40 = por %p38, %p39
      %p41 = scmp.ne.s32.totalorder %s33, %s36
      %p42 = scmp.eq.s32.totalorder %s11, 0
      %p43 = por %p41, %p42
      %p44 = scmp.ne.s32.totalorder %s33, %s36
      %p45 = scmp.eq.s32.totalorder %s16, 1
      %p46 = por %p44, %p45
      %p47 = scmp.ne.s32.totalorder %s36, %s37
      %p48 = scmp.eq.s32.totalorder %s16, 0
      %p49 = por %p47, %p48
      %p50 = scmp.ne.s32.totalorder %s36, %s37
      %p51 = scmp.eq.s32.totalorder %s17, 1
      %p52 = por %p50, %p51
      %p54 = scmp.ne.s32.totalorder %s37, %s53
      %p55 = scmp.eq.s32.totalorder %s17, 0
      %p56 = por %p54, %p55
      %s58 = sadd.s32 %s57, 1
      %p61 = scmp.eq.s32.totalorder %s11, 1
      %p62 = scmp.ne.s32.totalorder %s57, %s59
      %p63 = scmp.eq.s32.totalorder %s11, 0
      %p64 = por %p62, %p63
      %p65 = scmp.ne.s32.totalorder %s57, %s59
      %p66 = scmp.eq.s32.totalorder %s16, 1
      %p67 = por %p65, %p66
      %p68 = scmp.ne.s32.totalorder %s59, %s60
      %p69 = scmp.eq.s32.totalorder %s16, 0
      %p70 = por %p68, %p69
      %p71 = scmp.ne.s32.totalorder %s59, %s60
      %p72 = scmp.eq.s32.totalorder %s17, 1
      %p73 = por %p71, %p72
      %p75 = scmp.ne.s32.totalorder %s60, %s74
      %p76 = scmp.eq.s32.totalorder %s17, 0
      %p77 = por %p75, %p76
      %s79 = sadd.s32 %s78, 1
      %p82 = scmp.eq.s32.totalorder %s11, 1
      %p83 = scmp.ne.s32.totalorder %s78, %s80
      %p84 = scmp.eq.s32.totalorder %s11, 0
      %p85 = por %p83, %p84
      %p86 = scmp.ne.s32.totalorder %s78, %s80
      %p87 = scmp.eq.s32.totalorder %s16, 1
      %p88 = por %p86, %p87
      %p89 = scmp.ne.s32.totalorder %s80, %s81
      %p90 = scmp.eq.s32.totalorder %s16, 0
      %p91 = por %p89, %p90
      %p92 = scmp.ne.s32.totalorder %s80, %s81
      %p93 = scmp.eq.s32.totalorder %s17, 1
      %p94 = por %p92, %p93
      %p96 = scmp.ne.s32.totalorder %s81, %s95
      %p97 = scmp.eq.s32.totalorder %s17, 0
      %p98 = por %p96, %p97
      %s99 = ssub.s32 %s18, %s30
      %p100 = scmp.eq.s32.totalorder %s99, 0
      %s102 = sadd.s32 %s101, 1
      %s103 = scalar_select %p100, %s101, %s102
      %p106 = pneg %p100
      %p107 = scmp.eq.s32.totalorder %s11, 1
      %p108 = por %p106, %p107
      %p109 = scmp.ne.s32.totalorder %s101, %s104
      %p110 = scmp.eq.s32.totalorder %s11, 0
      %p111 = por %p109, %p110
      %p112 = scmp.ne.s32.totalorder %s101, %s104
      %p113 = scmp.eq.s32.totalorder %s16, 1
      %p114 = por %p112, %p113
      %p115 = scmp.ne.s32.totalorder %s104, %s105
      %p116 = scmp.eq.s32.totalorder %s16, 0
      %p117 = por %p115, %p116
      %p118 = scmp.ne.s32.totalorder %s104, %s105
      %p119 = scmp.eq.s32.totalorder %s17, 1
      %p120 = por %p118, %p119
      %p122 = scmp.ne.s32.totalorder %s105, %s121
      %p123 = scmp.eq.s32.totalorder %s17, 0
      %p124 = por %p122, %p123
      %p125 = scmp.le.s32.totalorder 1, %s11
      %p126 = scmp.lt.s32.totalorder %s11, 3
      %p127 = pnand %p125, %p126
      %p128 = pneg %p127
      // Predicated region
      $region9: #{tpu_custom_call.1} parent=5 // pred_check
        _
      $region10: #{tpu_custom_call.1} parent=5 // pred_check_branch
        %130 = sbr.rel (%p127) target = $region12
      $region11: #{tpu_custom_call.1} parent=5 // pred_region
        %s131 = ssub.s32 %s11, 1
        // Predicated region
        $region13: #{tpu_custom_call.1} parent=11 // pred_check
          %p132 = pneg %p49
        $region14: #{tpu_custom_call.1} parent=11 // pred_check_branch
          %134 = sbr.rel (%p132) target = $region16
        $region15: #{tpu_custom_call.1} parent=11 // pred_region
          %p135 = scmp.lt.s32.totalorder %s20, 0
          %s136 = scalar_select %p135, %s20, 0
          %s137 = smul.addr %s136, 2
          %s138 = smul.addr %s137, 8
          %s139 = scalar_lea.vmem %s0, %s138
        $region16: #{tpu_custom_call.1} parent=11 // pred_fallthru
          _
        // Predicated region
        $region17: #{tpu_custom_call.1} parent=11 // pred_check
          %p140 = pneg %p70
        $region18: #{tpu_custom_call.1} parent=11 // pred_check_branch
          %142 = sbr.rel (%p140) target = $region20
        $region19: #{tpu_custom_call.1} parent=11 // pred_region
          %144 = vsyncadd [#allocation3], 0
          %s145 = sshll.u32 %s1, 4
          %s146 = int_to_ptr.hbm [resolvable:$true] %s145
          %s147 = sshll.u32 [#allocation2], 4
          %s148 = int_to_ptr.vmem [resolvable:$true] %s147
          %153 = dma.hbm_to_vmem [thread:$0]  %s146, 8192, %s148, [#allocation3], 128, 128, 8
        $region20: #{tpu_custom_call.1} parent=11 // pred_fallthru
          _
        // Predicated region
        $region21: #{tpu_custom_call.1} parent=11 // pred_check
          %p154 = pneg %p91
        $region22: #{tpu_custom_call.1} parent=11 // pred_check_branch
          %156 = sbr.rel (%p154) target = $region24
        $region23: #{tpu_custom_call.1} parent=11 // pred_region
          _
        $region24: #{tpu_custom_call.1} parent=11 // pred_fallthru
          _
      $region12: #{tpu_custom_call.1} parent=5 // pred_fallthru
        _
      %p157 = scmp.lt.s32.totalorder %s11, 2
      // Predicated region
      $region25: #{tpu_custom_call.1} parent=5 // pred_check
        %p158 = pneg %p157
      $region26: #{tpu_custom_call.1} parent=5 // pred_check_branch
        %160 = sbr.rel (%p158) target = $region28
      $region27: #{tpu_custom_call.1} parent=5 // pred_region
        _
      $region28: #{tpu_custom_call.1} parent=5 // pred_fallthru
        _
      %p161 = scmp.le.s32.totalorder 1, %s11
      %p162 = scmp.lt.s32.totalorder %s11, 3
      %p163 = pnand %p161, %p162
      %p164 = pneg %p163
      // Predicated region
      $region29: #{tpu_custom_call.1} parent=5 // pred_check
        _
      $region30: #{tpu_custom_call.1} parent=5 // pred_check_branch
        %166 = sbr.rel (%p163) target = $region32
      $region31: #{tpu_custom_call.1} parent=5 // pred_region
        %s167 = ssub.s32 %s11, 1
        // Predicated region
        $region33: #{tpu_custom_call.1} parent=31 // pred_check
          %p168 = pneg %p70
        $region34: #{tpu_custom_call.1} parent=31 // pred_check_branch
          %170 = sbr.rel (%p168) target = $region36
        $region35: #{tpu_custom_call.1} parent=31 // pred_region
          %172 = dma.done [#allocation3], 8192
        $region36: #{tpu_custom_call.1} parent=31 // pred_fallthru
          _
        %p173 = scmp.lt.s32.totalorder %s20, 0
        %s174 = scalar_select %p173, %s20, 0
        %s175 = smul.addr %s174, 2
        %s176 = smul.addr %s175, 8
        %s177 = scalar_lea.vmem %s0, %s176
        %p178 = pneg %p49
        %p179 = pneg %p46
        %p180 = pneg %p70
        %p181 = pneg %p67
        %p182 = pneg %p91
        %p183 = pneg %p88
        %p184 = pneg %p117
        %p185 = pneg %p114
        %p186 = scmp.lt.s32.totalorder %s20, 0
        %s187 = scalar_select %p186, %s20, 0
        %s188 = smul.addr %s187, 2
        %s189 = smul.addr %s188, 8
        %s190 = scalar_lea.vmem %s0, %s189
        %p191 = scmp.eq.s32.totalorder %s21, 0
        // Predicated region
        $region37: #{tpu_custom_call.1} parent=31 // pred_check
          %p192 = pneg %p191
        $region38: #{tpu_custom_call.1} parent=31 // pred_check_branch
          %194 = sbr.rel (%p192) target = $region40
        $region39: #{tpu_custom_call.1} parent=31 // pred_region
          %v195 = vld [vmem:[%s190] sm:$0xff]
          %v196 = vld [vmem:[%s190 + $0x8] sm:$0xff]
          %197 = vst [vmem:[#allocation5] sm:$0xff] %v195
          %198 = vst [vmem:[#allocation5 + $0x8] sm:$0xff] %v196
        $region40: #{tpu_custom_call.1} parent=31 // pred_fallthru
          _
        %s199 = smul.u32 %s21, 64
        %s200 = smul.addr %s199, 4
        %s201 = scalar_lea.vmem [#allocation2], %s200
        %v202 = vld [vmem:[%s201] sm:$0xff]
        %v203 = vld [vmem:[%s201 + $0x8] sm:$0xff]
        %v204 = vld [vmem:[%s201 + $0x10] sm:$0xff]
        %v205 = vld [vmem:[%s201 + $0x18] sm:$0xff]
        %v206 = vld [vmem:[%s201 + $0x20] sm:$0xff]
        %v207 = vld [vmem:[%s201 + $0x28] sm:$0xff]
        %v208 = vld [vmem:[%s201 + $0x30] sm:$0xff]
        %v209 = vld [vmem:[%s201 + $0x38] sm:$0xff]
        %v210 = vld [vmem:[%s201 + $0x40] sm:$0xff]
        %v211 = vld [vmem:[%s201 + $0x48] sm:$0xff]
        %v212 = vld [vmem:[%s201 + $0x50] sm:$0xff]
        %v213 = vld [vmem:[%s201 + $0x58] sm:$0xff]
        %v214 = vld [vmem:[%s201 + $0x60] sm:$0xff]
        %v215 = vld [vmem:[%s201 + $0x68] sm:$0xff]
        %v216 = vld [vmem:[%s201 + $0x70] sm:$0xff]
        %v217 = vld [vmem:[%s201 + $0x78] sm:$0xff]
        %v218 = vld [vmem:[%s201 + $0x80] sm:$0xff]
        %v219 = vld [vmem:[%s201 + $0x88] sm:$0xff]
        %v220 = vld [vmem:[%s201 + $0x90] sm:$0xff]
        %v221 = vld [vmem:[%s201 + $0x98] sm:$0xff]
        %v222 = vld [vmem:[%s201 + $0xa0] sm:$0xff]
        %v223 = vld [vmem:[%s201 + $0xa8] sm:$0xff]
        %v224 = vld [vmem:[%s201 + $0xb0] sm:$0xff]
        %v225 = vld [vmem:[%s201 + $0xb8] sm:$0xff]
        %v226 = vld [vmem:[%s201 + $0xc0] sm:$0xff]
        %v227 = vld [vmem:[%s201 + $0xc8] sm:$0xff]
        %v228 = vld [vmem:[%s201 + $0xd0] sm:$0xff]
        %v229 = vld [vmem:[%s201 + $0xd8] sm:$0xff]
        %v230 = vld [vmem:[%s201 + $0xe0] sm:$0xff]
        %v231 = vld [vmem:[%s201 + $0xe8] sm:$0xff]
        %v232 = vld [vmem:[%s201 + $0xf0] sm:$0xff]
        %v233 = vld [vmem:[%s201 + $0xf8] sm:$0xff]
        %s234 = smul.u32 %s21, 2
        %s235 = smul.addr %s234, 4
        %s236 = scalar_lea.vmem %s2, %s235
        %v237 = vld [vmem:[%s236] sm:$0x77]
        %v238 = vld [vmem:[#allocation5] sm:$0xff]
        %v239 = vld [vmem:[#allocation5 + $0x8] sm:$0xff]
        %v240 = vpack.c.bf16 %v238, %v238
        %v241 = vpack.c.bf16 %v239, %v239
        %v243 = vperm.slane %v237, 0
        %v244 = vperm.slane %v237, 4
        %v247 = vperm.slane %v243, 0
        %v248 = vperm.slane %v244, 0
        %v281 = vunpack.c.l.b16 %v202
        %v282 = vunpack.c.h.b16 %v202
        %v283 = vunpack.c.l.b16 %v203
        %v284 = vunpack.c.h.b16 %v203
        %v285 = vunpack.c.l.b16 %v204
        %v286 = vunpack.c.h.b16 %v204
        %v287 = vunpack.c.l.b16 %v205
        %v288 = vunpack.c.h.b16 %v205
        %v289 = vunpack.c.l.b16 %v206
        %v290 = vunpack.c.h.b16 %v206
        %v291 = vunpack.c.l.b16 %v207
        %v292 = vunpack.c.h.b16 %v207
        %v293 = vunpack.c.l.b16 %v208
        %v294 = vunpack.c.h.b16 %v208
        %v295 = vunpack.c.l.b16 %v209
        %v296 = vunpack.c.h.b16 %v209
        %v297 = vunpack.c.l.b16 %v210
        %v298 = vunpack.c.h.b16 %v210
        %v299 = vunpack.c.l.b16 %v211
        %v300 = vunpack.c.h.b16 %v211
        %v301 = vunpack.c.l.b16 %v212
        %v302 = vunpack.c.h.b16 %v212
        %v303 = vunpack.c.l.b16 %v213
        %v304 = vunpack.c.h.b16 %v213
        %v305 = vunpack.c.l.b16 %v214
        %v306 = vunpack.c.h.b16 %v214
        %v307 = vunpack.c.l.b16 %v215
        %v308 = vunpack.c.h.b16 %v215
        %v309 = vunpack.c.l.b16 %v216
        %v310 = vunpack.c.h.b16 %v216
        %v311 = vunpack.c.l.b16 %v217
        %v312 = vunpack.c.h.b16 %v217
        %v313 = vunpack.c.l.b16 %v218
        %v314 = vunpack.c.h.b16 %v218
        %v315 = vunpack.c.l.b16 %v219
        %v316 = vunpack.c.h.b16 %v219
        %v317 = vunpack.c.l.b16 %v220
        %v318 = vunpack.c.h.b16 %v220
        %v319 = vunpack.c.l.b16 %v221
        %v320 = vunpack.c.h.b16 %v221
        %v321 = vunpack.c.l.b16 %v222
        %v322 = vunpack.c.h.b16 %v222
        %v323 = vunpack.c.l.b16 %v223
        %v324 = vunpack.c.h.b16 %v223
        %v325 = vunpack.c.l.b16 %v224
        %v326 = vunpack.c.h.b16 %v224
        %v327 = vunpack.c.l.b16 %v225
        %v328 = vunpack.c.h.b16 %v225
        %v329 = vunpack.c.l.b16 %v226
        %v330 = vunpack.c.h.b16 %v226
        %v331 = vunpack.c.l.b16 %v227
        %v332 = vunpack.c.h.b16 %v227
        %v333 = vunpack.c.l.b16 %v228
        %v334 = vunpack.c.h.b16 %v228
        %v335 = vunpack.c.l.b16 %v229
        %v336 = vunpack.c.h.b16 %v229
        %v337 = vunpack.c.l.b16 %v230
        %v338 = vunpack.c.h.b16 %v230
        %v339 = vunpack.c.l.b16 %v231
        %v340 = vunpack.c.h.b16 %v231
        %v341 = vunpack.c.l.b16 %v232
        %v342 = vunpack.c.h.b16 %v232
        %v343 = vunpack.c.l.b16 %v233
        %v344 = vunpack.c.h.b16 %v233
        %v345 = vpack.c.b16 %v283, %v281
        %v346 = vpack.c.b16 %v284, %v282
        %v347 = vpack.c.b16 %v287, %v285
        %v348 = vpack.c.b16 %v288, %v286
        %v349 = vpack.c.b16 %v291, %v289
        %v350 = vpack.c.b16 %v292, %v290
        %v351 = vpack.c.b16 %v295, %v293
        %v352 = vpack.c.b16 %v296, %v294
        %v353 = vpack.c.b16 %v299, %v297
        %v354 = vpack.c.b16 %v300, %v298
        %v355 = vpack.c.b16 %v303, %v301
        %v356 = vpack.c.b16 %v304, %v302
        %v357 = vpack.c.b16 %v307, %v305
        %v358 = vpack.c.b16 %v308, %v306
        %v359 = vpack.c.b16 %v311, %v309
        %v360 = vpack.c.b16 %v312, %v310
        %v361 = vpack.c.b16 %v315, %v313
        %v362 = vpack.c.b16 %v316, %v314
        %v363 = vpack.c.b16 %v319, %v317
        %v364 = vpack.c.b16 %v320, %v318
        %v365 = vpack.c.b16 %v323, %v321
        %v366 = vpack.c.b16 %v324, %v322
        %v367 = vpack.c.b16 %v327, %v325
        %v368 = vpack.c.b16 %v328, %v326
        %v369 = vpack.c.b16 %v331, %v329
        %v370 = vpack.c.b16 %v332, %v330
        %v371 = vpack.c.b16 %v335, %v333
        %v372 = vpack.c.b16 %v336, %v334
        %v373 = vpack.c.b16 %v339, %v337
        %v374 = vpack.c.b16 %v340, %v338
        %v375 = vpack.c.b16 %v343, %v341
        %v376 = vpack.c.b16 %v344, %v342
        %409 = vmatpush.bf16.msra.mxu0 %v359
        %410 = vmatpush.bf16.msra.mxu0 %v357
        %411 = vmatpush.bf16.msra.mxu0 %v355
        %412 = vmatpush.bf16.msra.mxu0 %v353
        %413 = vmatpush.bf16.msra.mxu0 %v351
        %414 = vmatpush.bf16.msra.mxu0 %v349
        %415 = vmatpush.bf16.msra.mxu0 %v347
        %416 = vmatpush.bf16.msra.mxu0 %v345
        %417 = vmatmul.bf16.gmra.mxu0 %v240
        %v418 = vpop.f32.mrf.mxu0
        %v419 = vadd.f32 %v247, %v418
        %v420 = vpop.f32.mrf.mxu0
        %421 = vdwg.mxu0
        %422 = vmatpush.bf16.msra.mxu0 %v375
        %423 = vmatpush.bf16.msra.mxu0 %v373
        %424 = vmatpush.bf16.msra.mxu0 %v371
        %425 = vmatpush.bf16.msra.mxu0 %v369
        %426 = vmatpush.bf16.msra.mxu0 %v367
        %427 = vmatpush.bf16.msra.mxu0 %v365
        %428 = vmatpush.bf16.msra.mxu0 %v363
        %429 = vmatpush.bf16.msra.mxu0 %v361
        %430 = vmatmul.bf16.gmra.mxu0 %v241
        %v431 = vpop.f32.mrf.mxu0
        %v432 = vadd.f32 %v419, %v431
        %v433 = vpop.f32.mrf.mxu0
        %434 = vdwg.mxu0
        %435 = vmatpush.bf16.msra.mxu0 %v360
        %436 = vmatpush.bf16.msra.mxu0 %v358
        %437 = vmatpush.bf16.msra.mxu0 %v356
        %438 = vmatpush.bf16.msra.mxu0 %v354
        %439 = vmatpush.bf16.msra.mxu0 %v352
        %440 = vmatpush.bf16.msra.mxu0 %v350
        %441 = vmatpush.bf16.msra.mxu0 %v348
        %442 = vmatpush.bf16.msra.mxu0 %v346
        %443 = vmatmul.bf16.gmra.mxu0 %v240
        %v444 = vpop.f32.mrf.mxu0
        %v445 = vadd.f32 %v248, %v444
        %v446 = vpop.f32.mrf.mxu0
        %447 = vdwg.mxu0
        %448 = vmatpush.bf16.msra.mxu0 %v376
        %449 = vmatpush.bf16.msra.mxu0 %v374
        %450 = vmatpush.bf16.msra.mxu0 %v372
        %451 = vmatpush.bf16.msra.mxu0 %v370
        %452 = vmatpush.bf16.msra.mxu0 %v368
        %453 = vmatpush.bf16.msra.mxu0 %v366
        %454 = vmatpush.bf16.msra.mxu0 %v364
        %455 = vmatpush.bf16.msra.mxu0 %v362
        %456 = vmatmul.bf16.gmra.mxu0 %v241
        %v457 = vpop.f32.mrf.mxu0
        %v458 = vadd.f32 %v445, %v457
        %v459 = vpop.f32.mrf.mxu0
        %460 = vdwg.mxu0
        %v461 = vadd.f32 %v432, %v458
        %462 = vadd.xlane.f32.xlu0 %v461
        %v463 = vpop.xlane.xlu0 %462
        %v464 = vrcp.pop 256.0
        %v465 = vmul.f32 256.0, %v464
        %v466 = vsub.f32 1.0, %v465
        %v467 = vmul.f32 %v464, %v466
        %v468 = vadd.f32 %v464, %v467
        %vm469 = vweird.f32 %v464
        %v470 = vsel %vm469, %v464, %v468
        %v471 = vmul.f32 %v463, %v470
        %v472 = vsub.f32 %v432, %v471
        %v473 = vsub.f32 %v458, %v471
        %v474 = vmul.f32 %v472, %v472
        %v475 = vmul.f32 %v473, %v473
        %v476 = vadd.f32 %v474, %v475
        %477 = vadd.xlane.f32.xlu0 %v476
        %v478 = vpop.xlane.xlu0 %477
        %v479 = vmul.f32 %v478, %v470
        %v480 = vadd.f32 %v479, 1e-05
        %v481 = vrsqrt.pop %v480
        %v482 = vmul.f32 %v481, %v480
        %v483 = vmul.f32 %v482, %v481
        %v484 = vmul.f32 0.5, %v483
        %v485 = vsub.f32 1.5, %v484
        %v486 = vmul.f32 %v481, %v485
        %vm487 = vweird.f32 %v480
        %vm488 = vweird.f32 %v481
        %vm489 = vmor %vm487, %vm488
        %v490 = vsel %vm489, %v481, %v486
        %v491 = vmul.f32 %v472, %v490
        %v492 = vmul.f32 %v473, %v490
        %v493 = vperm.slane %v237, 1
        %v494 = vperm.slane %v237, 5
        %v497 = vperm.slane %v493, 1
        %v498 = vperm.slane %v494, 1
        %v499 = vmul.f32 %v491, %v497
        %v500 = vmul.f32 %v492, %v498
        %v501 = vperm.slane %v237, 2
        %v502 = vperm.slane %v237, 6
        %v505 = vperm.slane %v501, 2
        %v506 = vperm.slane %v502, 2
        %v507 = vadd.f32 %v499, %v505
        %v508 = vadd.f32 %v500, %v506
        %v509 = vmul.f32 %v507, 0.5
        %v510 = vmul.f32 %v508, 0.5
        %v511 = vrcp.pop 1.4142135
        %v512 = vmul.f32 1.4142135, %v511
        %v513 = vsub.f32 1.0, %v512
        %v514 = vmul.f32 %v511, %v513
        %v515 = vadd.f32 %v511, %v514
        %vm516 = vweird.f32 %v511
        %v517 = vsel %vm516, %v511, %v515
        %v518 = vmul.f32 %v507, %v517
        %v519 = vmul.f32 %v508, %v517
        %v520 = vmul.f32 %v518, %v518
        %v521 = vmin.f32 16.0, %v520
        %v522 = vmul.f32 %v521, 2.1237322e-06
        %v523 = vadd.f32 %v522, 0.00028619796
        %v524 = vmul.f32 %v521, %v523
        %v525 = vadd.f32 %v524, 0.0036580483
        %v526 = vmul.f32 %v521, %v525
        %v527 = vadd.f32 %v526, 0.05243302
        %v528 = vmul.f32 %v521, %v527
        %v529 = vadd.f32 %v528, 0.18741608
        %v530 = vmul.f32 %v521, %v529
        %v531 = vadd.f32 %v530, 1.1283791
        %v532 = vmul.f32 %v518, %v531
        %v533 = vmul.f32 %v521, 3.8918573e-05
        %v534 = vadd.f32 %v533, 0.001143296
        %v535 = vmul.f32 %v521, %v534
        %v536 = vadd.f32 %v535, 0.014752088
        %v537 = vmul.f32 %v521, %v536
        %v538 = vadd.f32 %v537, 0.112945676
        %v539 = vmul.f32 %v521, %v538
        %v540 = vadd.f32 %v539, 0.4994258
        %v541 = vmul.f32 %v521, %v540
        %v542 = vadd.f32 %v541, 1.0
        %v543 = vrcp.pop %v542
        %v544 = vmul.f32 %v542, %v543
        %v545 = vsub.f32 1.0, %v544
        %v546 = vmul.f32 %v543, %v545
        %v547 = vadd.f32 %v543, %v546
        %vm548 = vweird.f32 %v542
        %vm549 = vweird.f32 %v543
        %vm550 = vmor %vm548, %vm549
        %v551 = vsel %vm550, %v543, %v547
        %v552 = vand.u32 2147483647, %v542
        %vm553 = vcmp.eq.f32.partialorder %v552, 8.507059e+37
        %v554 = vand.u32 %v542, 2147483648
        %v555 = vor.u32 1.1754944e-38, %v554
        %v556 = vsel %vm553, %v555, %v551
        %v557 = vmul.f32 %v532, %v556
        %v558 = vmin.f32 %v557, 1.0
        %v559 = vmax.f32 %v558, -1.0
        %v560 = vmul.f32 %v519, %v519
        %v561 = vmin.f32 16.0, %v560
        %v562 = vmul.f32 %v561, 2.1237322e-06
        %v563 = vadd.f32 %v562, 0.00028619796
        %v564 = vmul.f32 %v561, %v563
        %v565 = vadd.f32 %v564, 0.0036580483
        %v566 = vmul.f32 %v561, %v565
        %v567 = vadd.f32 %v566, 0.05243302
        %v568 = vmul.f32 %v561, %v567
        %v569 = vadd.f32 %v568, 0.18741608
        %v570 = vmul.f32 %v561, %v569
        %v571 = vadd.f32 %v570, 1.1283791
        %v572 = vmul.f32 %v519, %v571
        %v573 = vmul.f32 %v561, 3.8918573e-05
        %v574 = vadd.f32 %v573, 0.001143296
        %v575 = vmul.f32 %v561, %v574
        %v576 = vadd.f32 %v575, 0.014752088
        %v577 = vmul.f32 %v561, %v576
        %v578 = vadd.f32 %v577, 0.112945676
        %v579 = vmul.f32 %v561, %v578
        %v580 = vadd.f32 %v579, 0.4994258
        %v581 = vmul.f32 %v561, %v580
        %v582 = vadd.f32 %v581, 1.0
        %v583 = vrcp.pop %v582
        %v584 = vmul.f32 %v582, %v583
        %v585 = vsub.f32 1.0, %v584
        %v586 = vmul.f32 %v583, %v585
        %v587 = vadd.f32 %v583, %v586
        %vm588 = vweird.f32 %v582
        %vm589 = vweird.f32 %v583
        %vm590 = vmor %vm588, %vm589
        %v591 = vsel %vm590, %v583, %v587
        %v592 = vand.u32 2147483647, %v582
        %vm593 = vcmp.eq.f32.partialorder %v592, 8.507059e+37
        %v594 = vand.u32 %v582, 2147483648
        %v595 = vor.u32 1.1754944e-38, %v594
        %v596 = vsel %vm593, %v595, %v591
        %v597 = vmul.f32 %v572, %v596
        %v598 = vmin.f32 %v597, 1.0
        %v599 = vmax.f32 %v598, -1.0
        %v600 = vadd.f32 %v559, 1.0
        %v601 = vadd.f32 %v599, 1.0
        %v602 = vmul.f32 %v509, %v600
        %v603 = vmul.f32 %v510, %v601
        %v604 = vadd.f32 %v602, %v238
        %v605 = vadd.f32 %v603, %v239
        %606 = vst [vmem:[#allocation5] sm:$0xff] %v604
        %607 = vst [vmem:[#allocation5 + $0x8] sm:$0xff] %v605
        // Predicated region
        $region41: #{tpu_custom_call.1} parent=31 // pred_check
          %p608 = pneg %p114
        $region42: #{tpu_custom_call.1} parent=31 // pred_check_branch
          %610 = sbr.rel (%p608) target = $region44
        $region43: #{tpu_custom_call.1} parent=31 // pred_region
          %612 = vsyncadd [#allocation4], 0
          %s613 = smul.addr %s20, 2
          %s614 = smul.addr %s613, 8
          %s615 = scalar_lea.hbm %s3, %s614
          %s617 = sshll.u32 [#allocation5], 4
          %s618 = int_to_ptr.vmem [resolvable:$true] %s617
          %s619 = sshll.u32 %s615, 4
          %s620 = int_to_ptr.hbm [resolvable:$true] %s619
          %622 = dma.vmem_to_hbm [thread:$0]  %s618, 256, %s620, [#allocation4]
        $region44: #{tpu_custom_call.1} parent=31 // pred_fallthru
          _
        // Predicated region
        $region45: #{tpu_custom_call.1} parent=31 // pred_check
          %p623 = pneg %p114
        $region46: #{tpu_custom_call.1} parent=31 // pred_check_branch
          %625 = sbr.rel (%p623) target = $region48
        $region47: #{tpu_custom_call.1} parent=31 // pred_region
          %627 = dma.done [#allocation4], 256
        $region48: #{tpu_custom_call.1} parent=31 // pred_fallthru
          _
      $region32: #{tpu_custom_call.1} parent=5 // pred_fallthru
        _
      %p628 = scmp.le.s32.totalorder 2, %s11
      // Predicated region
      $region49: #{tpu_custom_call.1} parent=5 // pred_check
        %p629 = pneg %p628
      $region50: #{tpu_custom_call.1} parent=5 // pred_check_branch
        %631 = sbr.rel (%p629) target = $region52
      $region51: #{tpu_custom_call.1} parent=5 // pred_region
        %s632 = ssub.s32 %s11, 2
      $region52: #{tpu_custom_call.1} parent=5 // pred_fallthru
        _
    $region6: #{tpu_custom_call.1} parent=1 // loop_footer
      %s15 = sadd.s32 1, %s11
    $region7: #{tpu_custom_call.1} parent=1 // loop_footer_branch
      %10 = sbr.rel target = $region3
    $region8: #{tpu_custom_call.1} parent=1 // loop_exit
      _
    %633 = vsyncpa [#allocation3], 1
    %s634 = scalar_lea.sflag [#allocation3], 1
    %635 = vsyncpa %s634, 1
    %636 = vsyncpa [#allocation4], 1
    %s637 = scalar_lea.sflag [#allocation4], 1
    %638 = vsyncpa %s637, 1

</llo_original>
